<compile_context>
chip_gen: v7x
topology: tpu7x:2x2x1
jax: 0.10.0
libtpu: 0.0.40
codegen_flags: <defaults>
</compile_context>

<pallas_src>
import functools
import math

import jax
import jax.numpy as jnp
from jax.experimental import pallas as pl
from jax.experimental.pallas import tpu as pltpu


def _softplus_kernel(b_ref, o_ref, *, eps):
    # softplus(b) = log(1 + exp(b)) = logaddexp(b, 0)  (numerically stable).
    # Keep the math in float32 (upcast once if b is ever stored narrower),
    # cast once on the store.
    b = b_ref[...].astype(jnp.float32)
    o_ref[...] = (jnp.logaddexp(b, 0.0) + eps).astype(o_ref.dtype)


def variance_encoder_forward(b, eps):
    """VarianceEncoder.forward: softplus(b) + eps, same shape/dtype as b."""
    orig_shape = b.shape
    c = b.size
    # Present the parameter as a (1, C) slab; full-array block, no grid.
    b2d = b.reshape(1, c)

    out2d = pl.pallas_call(
        functools.partial(_softplus_kernel, eps=float(eps)),
        out_shape=jax.ShapeDtypeStruct((1, c), b.dtype),
        in_specs=[pl.BlockSpec(memory_space=pltpu.MemorySpace.VMEM)],
        out_specs=pl.BlockSpec(memory_space=pltpu.MemorySpace.VMEM),
        cost_estimate=pl.CostEstimate(
            flops=2 * c,
            transcendentals=2 * c,
            bytes_accessed=2 * c * jnp.dtype(b.dtype).itemsize,
        ),
    )(b2d)

    return out2d.reshape(orig_shape)


def make_variance_encoder_params(shape, init=0.1, channelwise=True, eps=1e-05):
    """Deterministic parameter init matching the PyTorch __init__."""
    init_val = math.log(math.exp(init - eps) - 1.0)
    if channelwise:
        if len(shape) == 4:
            b_shape = (1, shape[1], 1, 1)
        elif len(shape) == 3:
            b_shape = (1, 1, shape[2])
        elif len(shape) == 2:
            b_shape = (1, shape[1])
        else:
            raise ValueError()
    else:
        b_shape = shape
    b = jnp.full(b_shape, init_val, dtype=jnp.float32)
    return b, eps


if __name__ == "__main__":
    key = jax.random.PRNGKey(0)

    # Small shapes: batch=2, channels=4, spatial=16 (NCHW), channelwise=True.
    B, C, H, W = 2, 4, 16, 16
    x = jax.random.normal(key, (B, C, H, W), dtype=jnp.float32)  # unused by forward

    b, eps = make_variance_encoder_params((B, C, H, W), init=0.1,
                                          channelwise=True, eps=1e-05)

    out = variance_encoder_forward(b, eps)
    out = jax.block_until_ready(out)

    # Reference check (softplus(b) + eps should recover `init` = 0.1 exactly-ish).
    ref = jnp.logaddexp(b, 0.0) + eps
    assert out.shape == (1, C, 1, 1), out.shape
    assert out.dtype == b.dtype, out.dtype
    assert jnp.allclose(out, ref, atol=1e-6), (out, ref)
    assert jnp.allclose(out, 0.1, atol=1e-5), out

    print("KERNEL_OK")
</pallas_src>

<mosaic_0001>
module attributes {stable_mosaic.version = 11 : i64} {
  func.func @_softplus_kernel(%arg0: memref<1x4xf32, #tpu.memory_space<vmem>>, %arg1: memref<1x4xf32, #tpu.memory_space<vmem>>) attributes {dimension_semantics = [], scalar_prefetch = 0 : i64, scratch_operands = 0 : i64, tpu.core_type = #tpu.core_type<tc>} {
    %c0 = arith.constant 0 : index
    %c0_0 = arith.constant 0 : index
    %0 = vector.load %arg0[%c0, %c0_0] : memref<1x4xf32, #tpu.memory_space<vmem>>, vector<1x4xf32>
    %cst = arith.constant 0.000000e+00 : f32
    %1 = vector.broadcast %cst : f32 to vector<1x4xf32>
    %2 = arith.maximumf %0, %1 : vector<1x4xf32>
    %3 = vector.broadcast %cst : f32 to vector<1x4xf32>
    %4 = arith.subf %0, %3 : vector<1x4xf32>
    %5 = arith.cmpf one, %4, %4 : vector<1x4xf32>
    %6 = vector.broadcast %cst : f32 to vector<1x4xf32>
    %7 = arith.addf %0, %6 : vector<1x4xf32>
    %8 = math.absf %4 : vector<1x4xf32>
    %cst_1 = arith.constant 0.000000e+00 : f32
    %9 = vector.broadcast %cst_1 : f32 to vector<1x4xf32>
    %10 = arith.subf %9, %8 : vector<1x4xf32>
    %11 = math.exp %10 : vector<1x4xf32>
    %12 = math.log1p %11 : vector<1x4xf32>
    %13 = arith.addf %2, %12 : vector<1x4xf32>
    %14 = arith.select %5, %7, %13 : vector<1x4xi1>, vector<1x4xf32>
    %cst_2 = arith.constant 9.99999974E-6 : f32
    %15 = vector.broadcast %cst_2 : f32 to vector<1x4xf32>
    %16 = arith.addf %14, %15 : vector<1x4xf32>
    %c0_3 = arith.constant 0 : index
    %c0_4 = arith.constant 0 : index
    %17 = vector.load %arg1[%c0_3, %c0_4] : memref<1x4xf32, #tpu.memory_space<vmem>>, vector<1x4xf32>
    tpu.vector_store %arg1[%c0_3, %c0_4], %16 {strides = array<i32>} : memref<1x4xf32, #tpu.memory_space<vmem>>, vector<1x4xf32>,
    return
  }
}

</mosaic_0001>

<llo_original>
// kernel: tpu_custom_call.1
$region0: #{tpu_custom_call.1}
  #allocation0 [shape = 'u32[]', space=smem, size = 0x4, offset = 0x4, fixed_abs, tag = 'smem constant byte address 0x4 - core index']
  #allocation1 [shape = 'u32[144,128]{1,0:T(1,128)}', space=vmem, size = 0x12000, scoped, tag = 'internal scratch']
  %s0 = inlined_call_operand.hbm [shape: f32[1,4], index: 0, kind: input, shape index: {}]
  %s1 = inlined_call_operand.hbm [shape: f32[1,4], index: 1, kind: output, shape index: {}]
  %s2 = sld [smem:[#allocation0]]
  $region18: #{tpu_custom_call.1} parent=0
    _
  %s4 = ssub.s32 1, %s2
  %s5 = scalar_select 0, %s4, %s2
  $region1: #{tpu_custom_call.1} parent=0
    #allocation2 [shape = 'u8[512]{0}', space=vmem, size = 0x400, scoped, tag = 'input window, operand 0, single buffered']
    #allocation3 [shape = 's32[1]{0}', space=sflag, size = 0x4, scoped, tag = 'scoped memory for tpu_custom_call.1']
    #allocation4 [shape = 's32[1]{0}', space=sflag, size = 0x4, scoped, tag = 'scoped memory for tpu_custom_call.1']
    #allocation5 [shape = 'u8[512]{0}', space=vmem, size = 0x400, scoped, tag = 'output window, operand 0, single buffered']
    %6 = vsyncpa [#allocation3], 0
    %7 = vsyncpa [#allocation4], 0
    // Predicated region
    $region2: #{tpu_custom_call.1} parent=1 // pred_check
      _
    $region3: #{tpu_custom_call.1} parent=1 // pred_check_branch
      %9 = sbr.rel (0) target = $region5
    $region4: #{tpu_custom_call.1} parent=1 // pred_region
      %s11 = ssub.s32 16, 16
      %12 = vsyncadd [#allocation3], %s11
      %s14 = sshll.u32 [#allocation2], 4
      %s15 = int_to_ptr.vmem [resolvable:$true] %s14
      %17 = dma.hbm_to_vmem [thread:$0]  %s0, 16, %s15, [#allocation3]
    $region5: #{tpu_custom_call.1} parent=1 // pred_fallthru
      _
    // Predicated region
    $region6: #{tpu_custom_call.1} parent=1 // pred_check
      _
    $region7: #{tpu_custom_call.1} parent=1 // pred_check_branch
      %19 = sbr.rel (0) target = $region9
    $region8: #{tpu_custom_call.1} parent=1 // pred_region
      %20 = dma.done [#allocation3], 16
    $region9: #{tpu_custom_call.1} parent=1 // pred_fallthru
      _
    %v21 = vld [vmem:[#allocation2] sm:$0x1]
    %v22 = vmax.f32 %v21, 0.0
    %vm23 = vcmp.ne.f32.partialorder %v21, %v21
    %v24 = vadd.f32 %v21, 0.0
    %v25 = vand.u32 2147483647, %v21
    %v26 = vsub.f32 0.0, %v25
    %v27 = vmul.f32 %v26, 1.442695
    %v28 = vpow.pop %v27
    %v29 = vadd.f32 %v28, 1.0
    %v30 = vlog2.pop %v29
    %v31 = vmul.f32 %v30, 0.6931472
    %v32 = vmul.f32 -0.5, %v28
    %v33 = vadd.f32 %v32, 1.0
    %v34 = vmul.f32 %v33, %v28
    %v35 = vand.u32 2147483647, %v28
    %vm36 = vcmp.lt.f32.partialorder %v35, 0.0004427343
    %v37 = vsel %vm36, %v34, %v31
    %v38 = vadd.f32 %v22, %v37
    %v39 = vsel %vm23, %v24, %v38
    %v40 = vadd.f32 %v39, 1e-05
    %vm41 = vcmask 24576
    %42 = vst.msk [vmem:[#allocation5] sm:$0x1] %vm41, %v40
    // Predicated region
    $region10: #{tpu_custom_call.1} parent=1 // pred_check
      _
    $region11: #{tpu_custom_call.1} parent=1 // pred_check_branch
      %44 = sbr.rel (0) target = $region13
    $region12: #{tpu_custom_call.1} parent=1 // pred_region
      %s46 = ssub.s32 16, 16
      %47 = vsyncadd [#allocation4], %s46
      %s49 = sshll.u32 [#allocation5], 4
      %s50 = int_to_ptr.vmem [resolvable:$true] %s49
      %52 = dma.vmem_to_hbm [thread:$0]  %s50, 16, %s1, [#allocation4]
    $region13: #{tpu_custom_call.1} parent=1 // pred_fallthru
      _
    // Predicated region
    $region14: #{tpu_custom_call.1} parent=1 // pred_check
      _
    $region15: #{tpu_custom_call.1} parent=1 // pred_check_branch
      %54 = sbr.rel (0) target = $region17
    $region16: #{tpu_custom_call.1} parent=1 // pred_region
      %55 = dma.done [#allocation4], 16
    $region17: #{tpu_custom_call.1} parent=1 // pred_fallthru
      _
    %56 = vsyncpa [#allocation3], 1
    %57 = vsyncpa [#allocation4], 1

</llo_original>
